<compile_context>
chip_gen: v7x
topology: tpu7x:2x2x1
jax: 0.10.0
libtpu: 0.0.40
codegen_flags: <defaults>
</compile_context>

<pallas_src>
import functools
import math

import jax
import jax.numpy as jnp
from jax.experimental import pallas as pl
from jax.experimental.pallas import tpu as pltpu


_NEG_BIG = -1e30  # exp(_NEG_BIG - m) == 0 in f32 for any running max m >= 0.


def _round_up(x, m):
    return (x + m - 1) // m * m


def _vmem_capacity_bytes():
    try:
        return int(pltpu.get_tpu_info().vmem_capacity_bytes)
    except Exception:
        return 64 << 20  # conservative (v7x-sized) fallback


# --------------------------------------------------------------------------
# Stage 1: scaled cosine similarity per row block.
# --------------------------------------------------------------------------
def _sim_kernel(e1_ref, e2_ref, sim_ref, *, scale):
    e1 = e1_ref[...].astype(jnp.float32)                      # [tile_b, D]
    e2 = e2_ref[...].astype(jnp.float32)                      # [tile_b, D]

    dot = jnp.sum(e1 * e2, axis=1, keepdims=True)             # [tile_b, 1]
    n1 = jnp.sum(e1 * e1, axis=1, keepdims=True)
    n2 = jnp.sum(e2 * e2, axis=1, keepdims=True)

    # F.normalize(x, dim=1): x / max(||x||, eps); fused into the dot product
    # so only [tile_b, 1] vectors are ever divided.
    eps = jnp.float32(1e-12)
    denom = jnp.maximum(jnp.sqrt(n1), eps) * jnp.maximum(jnp.sqrt(n2), eps)
    sim_ref[...] = dot / denom * jnp.float32(scale)           # [tile_b, 1]


# --------------------------------------------------------------------------
# Stage 2 (fast path): factorized masked pairwise sum.
#   a_col = exp(sim_i), b_row = exp(-sim_j); term = mask ? a*b : 0.
# --------------------------------------------------------------------------
def _pair_sum_kernel(a_col_ref, d_col_ref, b_row_ref, d_row_ref,
                     out_ref, acc_ref):
    r = pl.program_id(1)

    @pl.when(r == 0)
    def _():
        acc_ref[...] = jnp.zeros_like(acc_ref)

    a = a_col_ref[...]                                        # (tile_r, 1)
    di = d_col_ref[...]                                       # (tile_r, 1)
    b = b_row_ref[...]                                        # (1, C) resident
    dj = d_row_ref[...]                                       # (1, C) resident

    # ~4 VALU ops/element: compare, mul, select, add.  No EUP, no XLU.
    term = jnp.where(di < dj, a * b, jnp.float32(0.0))        # (tile_r, C)

    # Fold sublane groups into the wide (8, C) accumulator with pure vreg adds
    # (leading-dim split reshape is layout-free) -- no per-step reduce-to-scalar
    # and no narrow scalar dependency across grid steps.
    folded = jnp.sum(term.reshape(term.shape[0] // 8, 8, term.shape[1]), axis=0)
    acc_ref[...] += folded

    @pl.when(r == pl.num_programs(1) - 1)
    def _():
        # One cross-lane reduce per column chunk (not per step).
        out_ref[...] = jnp.sum(acc_ref[...], axis=1, keepdims=True)   # (8, 1)


# --------------------------------------------------------------------------
# Stage 2 (fallback for very large `scale`): online logsumexp, numerically safe.
# --------------------------------------------------------------------------
def _lse_stable_kernel(sim_col_ref, d_col_ref, sim_row_ref, d_row_ref,
                       out_ref, m_sc, s_sc):
    i = pl.program_id(0)

    @pl.when(i == 0)
    def _():
        # Prepended zero of the reference loss: running max 0, running sum 1.
        m_sc[...] = jnp.zeros_like(m_sc)
        s_sc[...] = jnp.ones_like(s_sc)

    diff = sim_col_ref[...] - sim_row_ref[...]                 # [tile_r, C]
    valid = d_col_ref[...] < d_row_ref[...]                    # [tile_r, C]
    masked = jnp.where(valid, diff, jnp.float32(_NEG_BIG))

    m_prev = m_sc[...]                                         # (1, 1)
    m_new = jnp.maximum(m_prev, jnp.max(masked))
    s_sc[...] = (s_sc[...] * jnp.exp(m_prev - m_new)
                 + jnp.sum(jnp.exp(masked - m_new)))
    m_sc[...] = m_new

    @pl.when(i == pl.num_programs(0) - 1)
    def _():
        out_ref[...] = m_sc[...] + jnp.log(s_sc[...])


# --------------------------------------------------------------------------
# Wrapper.
# --------------------------------------------------------------------------
def cosent_loss(embeddings1, embeddings2, distances, scale=20.0,
                max_rows_per_step=None):
    """embeddings1/2: [B, D] (any float dtype); distances: [B]. Scalar f32 loss."""
    B, D = embeddings1.shape

    # Per-generation budgets: 128-MiB-VMEM parts (v5e/v6e) get a 16 MiB slab,
    # v7x (64 MiB per TensorCore) keeps ~8 MiB; vmem_limit_bytes raised to match.
    vmem_cap = _vmem_capacity_bytes()
    big_vmem = vmem_cap >= (100 << 20)
    slab_budget = (16 << 20) if big_vmem else (8 << 20)
    soft_cap = (96 << 20) if big_vmem else (48 << 20)

    # ---------------- Stage 1: scaled cosine similarities -----------------
    itemsize = jnp.dtype(embeddings1.dtype).itemsize
    # per row: 2 inputs x 2 pipeline buffers (native dtype) + f32 in-kernel temps
    row_cost = D * (4 * itemsize + 16)
    budget1 = (24 << 20) if big_vmem else (12 << 20)
    cap_rows = max(128, budget1 // max(row_cost, 1) // 128 * 128)
    tile_b1 = B if B <= cap_rows else cap_rows        # ragged last block if needed
    nb1 = pl.cdiv(B, tile_b1)
    vmem1 = int(min(max(32 << 20, tile_b1 * row_cost + (4 << 20)), soft_cap))

    sim_col = pl.pallas_call(
        functools.partial(_sim_kernel, scale=float(scale)),
        out_shape=jax.ShapeDtypeStruct((B, 1), jnp.float32),
        grid=(nb1,),
        in_specs=[pl.BlockSpec((tile_b1, D), lambda i: (i, 0)),
                  pl.BlockSpec((tile_b1, D), lambda i: (i, 0))],
        out_specs=pl.BlockSpec((tile_b1, 1), lambda i: (i, 0)),
        compiler_params=pltpu.CompilerParams(
            dimension_semantics=("parallel",),
            vmem_limit_bytes=vmem1),
    )(embeddings1, embeddings2)

    sim = sim_col[:, 0]                                # (B,) -- tiny XLA ops below
    d = distances.astype(jnp.float32)

    # Factorized exp path is valid while every factor and the accumulated sum
    # stay comfortably inside f32 range (default scale=20 -> bound 40 << 88).
    use_factorized = (2.0 * float(scale)
                      + math.log(float(B) * float(B) + 1.0)) < 85.0

    if use_factorized:
        # Column (j) dimension padded to full 128-lane vregs.
        Cp = _round_up(B, 128)
        if Cp >= 256:
            ncc = 2                                    # >=2 chunks -> both v7x TCs
            Cp = _round_up(B, 256)
        else:
            ncc = 1
        col_chunk = Cp // ncc

        tile_r = min(slab_budget // (4 * col_chunk), _round_up(B, 8))
        if max_rows_per_step is not None:
            tile_r = min(tile_r, int(max_rows_per_step))
        tile_r = max(8, tile_r // 8 * 8)
        Rp = _round_up(B, tile_r)
        nrb = Rp // tile_r

        # Only O(B) vectors are padded (never the [B, D] embeddings).
        a_col = jnp.pad(jnp.exp(sim), (0, Rp - B)).reshape(Rp, 1)
        b_row = jnp.pad(jnp.exp(-sim), (0, Cp - B)).reshape(1, Cp)
        d_col = jnp.pad(d, (0, Rp - B),
                        constant_values=float("inf")).reshape(Rp, 1)
        d_row = jnp.pad(d, (0, Cp - B),
                        constant_values=float("-inf")).reshape(1, Cp)

        slab_bytes = 4 * tile_r * col_chunk
        vmem2 = int(min(max(32 << 20, 3 * slab_bytes + (8 << 20)), soft_cap))

        partials = pl.pallas_call(
            _pair_sum_kernel,
            out_shape=jax.ShapeDtypeStruct((8 * ncc, 1), jnp.float32),
            grid=(ncc, nrb),
            in_specs=[pl.BlockSpec((tile_r, 1), lambda c, r: (r, 0)),
                      pl.BlockSpec((tile_r, 1), lambda c, r: (r, 0)),
                      pl.BlockSpec((1, col_chunk), lambda c, r: (0, c)),
                      pl.BlockSpec((1, col_chunk), lambda c, r: (0, c))],
            out_specs=pl.BlockSpec((8, 1), lambda c, r: (c, 0)),
            scratch_shapes=[pltpu.VMEM((8, col_chunk), jnp.float32)],
            compiler_params=pltpu.CompilerParams(
                dimension_semantics=("parallel", "arbitrary"),
                vmem_limit_bytes=vmem2),
        )(a_col, d_col, b_row, d_row)

        # Prepended zero of the reference loss == the "+1" of log1p.
        return jnp.log1p(jnp.sum(partials))

    # ---- numerically safe fallback for very large `scale`: online LSE ----
    Cp = _round_up(B, 128)
    tile_r = min(slab_budget // (4 * Cp), _round_up(B, 8))
    if max_rows_per_step is not None:
        tile_r = min(tile_r, int(max_rows_per_step))
    tile_r = max(8, tile_r // 8 * 8)
    Rp = _round_up(B, tile_r)
    nrb = Rp // tile_r

    s_col = jnp.pad(sim, (0, Rp - B)).reshape(Rp, 1)
    s_row = jnp.pad(sim, (0, Cp - B)).reshape(1, Cp)
    d_col = jnp.pad(d, (0, Rp - B), constant_values=float("inf")).reshape(Rp, 1)
    d_row = jnp.pad(d, (0, Cp - B), constant_values=float("-inf")).reshape(1, Cp)

    slab_bytes = 4 * tile_r * Cp
    vmem2 = int(min(max(32 << 20, 3 * slab_bytes + (8 << 20)), soft_cap))

    out = pl.pallas_call(
        _lse_stable_kernel,
        out_shape=jax.ShapeDtypeStruct((1, 1), jnp.float32),
        grid=(nrb,),
        in_specs=[pl.BlockSpec((tile_r, 1), lambda i: (i, 0)),
                  pl.BlockSpec((tile_r, 1), lambda i: (i, 0)),
                  pl.BlockSpec((1, Cp), lambda i: (0, 0)),
                  pl.BlockSpec((1, Cp), lambda i: (0, 0))],
        out_specs=pl.BlockSpec((1, 1), lambda i: (0, 0)),
        scratch_shapes=[pltpu.VMEM((1, 1), jnp.float32),
                        pltpu.VMEM((1, 1), jnp.float32)],
        compiler_params=pltpu.CompilerParams(
            dimension_semantics=("arbitrary",),
            vmem_limit_bytes=vmem2),
    )(s_col, d_col, s_row, d_row)
    return out[0, 0]


def _reference_cosent(e1, e2, dist, scale=20.0):
    # Pure-JAX mirror of the PyTorch module.
    eps = 1e-12
    n1 = e1 / jnp.maximum(jnp.linalg.norm(e1, axis=1, keepdims=True), eps)
    n2 = e2 / jnp.maximum(jnp.linalg.norm(e2, axis=1, keepdims=True), eps)
    sim = jnp.sum(n1 * n2, axis=1) * scale
    sim_diff = sim[:, None] - sim[None, :]
    labels = (dist[:, None] < dist[None, :]).astype(jnp.float32)
    sim_diff = sim_diff - (1.0 - labels) * 1e12
    flat = jnp.concatenate([jnp.zeros((1,), jnp.float32), sim_diff.reshape(-1)])
    return jax.scipy.special.logsumexp(flat)


if __name__ == "__main__":
    key = jax.random.PRNGKey(0)

    # Test 1: small batch, default scale (factorized fast path).
    B, D = 8, 32
    k1, k2, k3 = jax.random.split(key, 3)
    e1 = jax.random.normal(k1, (B, D), dtype=jnp.float32)
    e2 = jax.random.normal(k2, (B, D), dtype=jnp.float32)
    dist = jax.random.uniform(k3, (B,), dtype=jnp.float32)

    loss = jax.block_until_ready(cosent_loss(e1, e2, dist, scale=20.0))
    ref = _reference_cosent(e1, e2, dist, scale=20.0)
    assert jnp.allclose(loss, ref, rtol=5e-5, atol=5e-4), (loss, ref)

    # Test 2: ragged batch (not a multiple of 8/128), 2 column chunks and
    # multiple row blocks carrying the wide accumulator.
    B2, D2 = 300, 48
    k4, k5, k6 = jax.random.split(k3, 3)
    e1b = jax.random.normal(k4, (B2, D2), dtype=jnp.float32)
    e2b = jax.random.normal(k5, (B2, D2), dtype=jnp.float32)
    db = jax.random.uniform(k6, (B2,), dtype=jnp.float32)

    loss2 = jax.block_until_ready(
        cosent_loss(e1b, e2b, db, scale=20.0, max_rows_per_step=64))
    ref2 = _reference_cosent(e1b, e2b, db, scale=20.0)
    assert jnp.allclose(loss2, ref2, rtol=5e-5, atol=5e-4), (loss2, ref2)

    # Test 3: very large scale -> numerically-safe online-logsumexp fallback.
    loss3 = jax.block_until_ready(cosent_loss(e1, e2, dist, scale=200.0))
    ref3 = _reference_cosent(e1, e2, dist, scale=200.0)
    assert jnp.allclose(loss3, ref3, rtol=5e-5, atol=5e-4), (loss3, ref3)

    print("KERNEL_OK")
</pallas_src>

<mosaic_0001>
module attributes {stable_mosaic.version = 11 : i64} {
  func.func @_sim_kernel(%arg0: i32, %arg1: memref<8x32xf32, #tpu.memory_space<vmem>>, %arg2: memref<8x32xf32, #tpu.memory_space<vmem>>, %arg3: memref<8x1xf32, #tpu.memory_space<vmem>>) attributes {dimension_semantics = [#tpu.dimension_semantics<parallel>], iteration_bounds = array<i64: 1>, scalar_prefetch = 0 : i64, scratch_operands = 0 : i64, tpu.core_type = #tpu.core_type<tc>, window_params = [{transform_indices = @transform_0, window_bounds = array<i64: 8, 32>}, {transform_indices = @transform_1, window_bounds = array<i64: 8, 32>}, {transform_indices = @transform_2, window_bounds = array<i64: 8, 1>}]} {
    %c0 = arith.constant 0 : index
    %c0_0 = arith.constant 0 : index
    %0 = vector.load %arg1[%c0, %c0_0] : memref<8x32xf32, #tpu.memory_space<vmem>>, vector<8x32xf32>
    %c0_1 = arith.constant 0 : index
    %c0_2 = arith.constant 0 : index
    %1 = vector.load %arg2[%c0_1, %c0_2] : memref<8x32xf32, #tpu.memory_space<vmem>>, vector<8x32xf32>
    %2 = arith.mulf %0, %1 : vector<8x32xf32>
    %cst = arith.constant dense<0.000000e+00> : vector<8xf32>
    %3 = vector.multi_reduction <add>, %2, %cst [1] : vector<8x32xf32> to vector<8xf32>
    %4 = vector.shape_cast %3 : vector<8xf32> to vector<8x1xf32>
    %5 = arith.mulf %0, %0 : vector<8x32xf32>
    %cst_3 = arith.constant dense<0.000000e+00> : vector<8xf32>
    %6 = vector.multi_reduction <add>, %5, %cst_3 [1] : vector<8x32xf32> to vector<8xf32>
    %7 = vector.shape_cast %6 : vector<8xf32> to vector<8x1xf32>
    %8 = arith.mulf %1, %1 : vector<8x32xf32>
    %cst_4 = arith.constant dense<0.000000e+00> : vector<8xf32>
    %9 = vector.multi_reduction <add>, %8, %cst_4 [1] : vector<8x32xf32> to vector<8xf32>
    %10 = vector.shape_cast %9 : vector<8xf32> to vector<8x1xf32>
    %11 = math.sqrt %7 : vector<8x1xf32>
    %cst_5 = arith.constant 9.99999996E-13 : f32
    %12 = vector.broadcast %cst_5 : f32 to vector<8x1xf32>
    %13 = arith.maximumf %11, %12 : vector<8x1xf32>
    %14 = math.sqrt %10 : vector<8x1xf32>
    %cst_6 = arith.constant 9.99999996E-13 : f32
    %15 = vector.broadcast %cst_6 : f32 to vector<8x1xf32>
    %16 = arith.maximumf %14, %15 : vector<8x1xf32>
    %17 = arith.mulf %13, %16 : vector<8x1xf32>
    %18 = arith.divf %4, %17 : vector<8x1xf32>
    %cst_7 = arith.constant 2.000000e+01 : f32
    %19 = vector.broadcast %cst_7 : f32 to vector<8x1xf32>
    %20 = arith.mulf %18, %19 : vector<8x1xf32>
    %c0_8 = arith.constant 0 : index
    %c0_9 = arith.constant 0 : index
    %21 = vector.load %arg3[%c0_8, %c0_9] : memref<8x1xf32, #tpu.memory_space<vmem>>, vector<8x1xf32>
    tpu.vector_store %arg3[%c0_8, %c0_9], %20 {strides = array<i32>} : memref<8x1xf32, #tpu.memory_space<vmem>>, vector<8x1xf32>,
    return
  }
  func.func @transform_0(%arg0: i32) -> (i32, i32) {
    %c0_i32 = arith.constant 0 : i32
    %c0_i32_0 = arith.constant 0 : i32
    return %arg0, %c0_i32 : i32, i32
  }
  func.func @transform_1(%arg0: i32) -> (i32, i32) {
    %c0_i32 = arith.constant 0 : i32
    %c0_i32_0 = arith.constant 0 : i32
    return %arg0, %c0_i32 : i32, i32
  }
  func.func @transform_2(%arg0: i32) -> (i32, i32) {
    %c0_i32 = arith.constant 0 : i32
    %c0_i32_0 = arith.constant 0 : i32
    return %arg0, %c0_i32 : i32, i32
  }
}

</mosaic_0001>

<llo_original>
// kernel: tpu_custom_call.1
$region0: #{tpu_custom_call.1}
  #allocation0 [shape = 'u32[]', space=smem, size = 0x4, offset = 0x4, fixed_abs, tag = 'smem constant byte address 0x4 - core index']
  #allocation1 [shape = 'u32[144,128]{1,0:T(1,128)}', space=vmem, size = 0x12000, scoped, tag = 'internal scratch']
  %s0 = inlined_call_operand.hbm [shape: f32[8,32], index: 0, kind: input, shape index: {}]
  %s1 = inlined_call_operand.hbm [shape: f32[8,32], index: 1, kind: input, shape index: {}]
  %s2 = inlined_call_operand.vmem [shape: f32[8,1], index: 2, kind: output, shape index: {}]
  %s3 = sld [smem:[#allocation0]]
  $region26: #{tpu_custom_call.1} parent=0
    _
  %s5 = ssub.s32 1, %s3
  %s6 = scalar_select 0, %s5, %s3
  $region1: #{tpu_custom_call.1} parent=0
    #allocation2 [shape = 'u8[4096]{0}', space=vmem, size = 0x1000, scoped, tag = 'input window, operand 0, single buffered']
    #allocation3 [shape = 's32[1]{0}', space=sflag, size = 0x4, scoped, tag = 'scoped memory for tpu_custom_call.1']
    #allocation4 [shape = 'u8[4096]{0}', space=vmem, size = 0x1000, scoped, tag = 'input window, operand 1, single buffered']
    #allocation5 [shape = 's32[1]{0}', space=sflag, size = 0x4, scoped, tag = 'scoped memory for tpu_custom_call.1']
    %7 = vsyncpa [#allocation3], 0
    %8 = vsyncpa [#allocation5], 0
    // Predicated region
    $region2: #{tpu_custom_call.1} parent=1 // pred_check
      _
    $region3: #{tpu_custom_call.1} parent=1 // pred_check_branch
      %10 = sbr.rel (0) target = $region5
    $region4: #{tpu_custom_call.1} parent=1 // pred_region
      %s12 = ssub.s32 128, 128
      %13 = vsyncadd [#allocation3], %s12
      %s15 = sshll.u32 [#allocation2], 4
      %s16 = int_to_ptr.vmem [resolvable:$true] %s15
      %18 = dma.hbm_to_vmem [thread:$0]  %s0, 128, %s16, [#allocation3]
    $region5: #{tpu_custom_call.1} parent=1 // pred_fallthru
      _
    // Predicated region
    $region6: #{tpu_custom_call.1} parent=1 // pred_check
      _
    $region7: #{tpu_custom_call.1} parent=1 // pred_check_branch
      %20 = sbr.rel (0) target = $region9
    $region8: #{tpu_custom_call.1} parent=1 // pred_region
      %s22 = ssub.s32 128, 128
      %23 = vsyncadd [#allocation5], %s22
      %s25 = sshll.u32 [#allocation4], 4
      %s26 = int_to_ptr.vmem [resolvable:$true] %s25
      %28 = dma.hbm_to_vmem [thread:$0]  %s1, 128, %s26, [#allocation5]
    $region9: #{tpu_custom_call.1} parent=1 // pred_fallthru
      _
    // Predicated region
    $region10: #{tpu_custom_call.1} parent=1 // pred_check
      _
    $region11: #{tpu_custom_call.1} parent=1 // pred_check_branch
      %30 = sbr.rel (0) target = $region13
    $region12: #{tpu_custom_call.1} parent=1 // pred_region
      %31 = dma.done [#allocation3], 128
    $region13: #{tpu_custom_call.1} parent=1 // pred_fallthru
      _
    // Predicated region
    $region14: #{tpu_custom_call.1} parent=1 // pred_check
      _
    $region15: #{tpu_custom_call.1} parent=1 // pred_check_branch
      %33 = sbr.rel (0) target = $region17
    $region16: #{tpu_custom_call.1} parent=1 // pred_region
      %34 = dma.done [#allocation5], 128
    $region17: #{tpu_custom_call.1} parent=1 // pred_fallthru
      _
    %v35 = vld [vmem:[#allocation2] sm:$0xff]
    %v36 = vld [vmem:[#allocation4] sm:$0xff]
    %v37 = vmul.f32 %v35, %v36
    %vm38 = vcmask 261120
    %v39 = vsel %vm38, %v37, 0.0
    %40 = vadd.xlane.f32.xlu0 %v39
    %v41 = vpop.xlane.xlu0 %40
    %v42 = vmul.f32 %v35, %v35
    %v43 = vsel %vm38, %v42, 0.0
    %44 = vadd.xlane.f32.xlu0 %v43
    %v45 = vpop.xlane.xlu0 %44
    %v46 = vmul.f32 %v36, %v36
    %v47 = vsel %vm38, %v46, 0.0
    %48 = vadd.xlane.f32.xlu0 %v47
    %v49 = vpop.xlane.xlu0 %48
    %v50 = vrsqrt.pop %v45
    %v51 = vmul.f32 %v45, %v50
    %vm52 = vcmp.eq.f32.partialorder %v45, inf
    %v53 = vsel %vm52, %v45, %v51
    %vm54 = vcmp.eq.f32.partialorder %v45, 0.0
    %v55 = vand.u32 %v45, 2147483648
    %v56 = vsel %vm54, %v55, %v53
    %v57 = vmax.f32 %v56, 1e-12
    %v58 = vrsqrt.pop %v49
    %v59 = vmul.f32 %v49, %v58
    %vm60 = vcmp.eq.f32.partialorder %v49, inf
    %v61 = vsel %vm60, %v49, %v59
    %vm62 = vcmp.eq.f32.partialorder %v49, 0.0
    %v63 = vand.u32 %v49, 2147483648
    %v64 = vsel %vm62, %v63, %v61
    %v65 = vmax.f32 %v64, 1e-12
    %v66 = vmul.f32 %v57, %v65
    %v67 = vrcp.pop %v66
    %v68 = vmul.f32 %v41, %v67
    %v69 = vmul.f32 %v68, 20.0
    %vm70 = vcmask 7168
    %71 = vst.msk [vmem:[%s2] sm:$0xff] %vm70, %v69
    // Predicated region
    $region18: #{tpu_custom_call.1} parent=1 // pred_check
      _
    $region19: #{tpu_custom_call.1} parent=1 // pred_check_branch
      %73 = sbr.rel (0) target = $region21
    $region20: #{tpu_custom_call.1} parent=1 // pred_region
      _
    $region21: #{tpu_custom_call.1} parent=1 // pred_fallthru
      _
    // Predicated region
    $region22: #{tpu_custom_call.1} parent=1 // pred_check
      _
    $region23: #{tpu_custom_call.1} parent=1 // pred_check_branch
      %75 = sbr.rel (0) target = $region25
    $region24: #{tpu_custom_call.1} parent=1 // pred_region
      _
    $region25: #{tpu_custom_call.1} parent=1 // pred_fallthru
      _
    %76 = vsyncpa [#allocation3], 1
    %77 = vsyncpa [#allocation5], 1

</llo_original>
